<compile_context>
chip_gen: v7x
topology: tpu7x:2x2x1
jax: 0.10.0
libtpu: 0.0.40
codegen_flags: <defaults>
</compile_context>

<pallas_src>
import jax
import jax.numpy as jnp
from jax.experimental import pallas as pl
from jax.experimental.pallas import tpu as pltpu

WEIGHT_DECAY = 1e-4
LANE = 128
SUBLANE = 8
NUM_CORE_PARTITIONS = 2              # v7x has 2 TensorCores; extra step is free on v5e/v6e
CHUNK_BYTES_BUDGET = 1 * 1024 * 1024  # per DMA slot; 2 MiB per double-buffered weight


def _round_up(x, m):
    return ((x + m - 1) // m) * m


def _plan_weight(shape2d, itemsize, chunk_bytes):
    """Static chunking plan for one (R, C) weight: (chunk_rows, n_chunks, n_slots)."""
    R, C = shape2d
    row_bytes = _round_up(C, LANE) * itemsize               # lane-padded VMEM bytes / row
    rows_fit = max(SUBLANE, (chunk_bytes // row_bytes) // SUBLANE * SUBLANE)
    chunk_rows = min(R, rows_fit)
    n_chunks = -(-R // chunk_rows)
    n_slots = 2 if n_chunks > 1 else 1                      # double-buffer only if needed
    return chunk_rows, n_chunks, n_slots


def _make_kernel(shapes2d, plans, core_of):
    num_w = len(shapes2d)

    def kernel(*refs):
        w_refs = refs[:num_w]                # HBM refs (memory_space=pl.ANY), read in place
        out_ref = refs[num_w]                # (SUBLANE, LANE) block for this partition
        scratch = refs[num_w + 1:]
        bufs = scratch[0::2]                 # per-weight VMEM (n_slots, chunk_rows, C)
        sems = scratch[1::2]                 # per-weight DMA semaphores (n_slots,)

        core_id = pl.program_id(0)

        # Each grid step owns one output block; define all lanes (lane-dense store).
        out_ref[...] = jnp.zeros_like(out_ref)

        def chunk_view(i, c):
            R, _ = shapes2d[i]
            chunk_rows, _, n_slots = plans[i]
            r0 = c * chunk_rows
            n = min(chunk_rows, R - r0)      # static: last chunk may be partial
            s = c % n_slots
            return r0, n, s

        def start_chunk(i, c):
            r0, n, s = chunk_view(i, c)
            pltpu.make_async_copy(w_refs[i].at[r0:r0 + n],
                                  bufs[i].at[s, 0:n],
                                  sems[i].at[s]).start()

        def wait_chunk(i, c):
            r0, n, s = chunk_view(i, c)
            pltpu.make_async_copy(w_refs[i].at[r0:r0 + n],
                                  bufs[i].at[s, 0:n],
                                  sems[i].at[s]).wait()

        for core in range(NUM_CORE_PARTITIONS):
            mine = tuple(i for i in range(num_w) if core_of[i] == core)
            if not mine:
                continue

            @pl.when(core_id == core)
            def _process(mine=mine):
                # Prime the pipeline with the first weight's first chunk.
                start_chunk(mine[0], 0)
                total = jnp.zeros((1, 1), jnp.float32)
                for idx, i in enumerate(mine):
                    if idx + 1 < len(mine):
                        # Overlap the next weight's first DMA with this weight's compute.
                        start_chunk(mine[idx + 1], 0)
                    _, n_chunks, _ = plans[i]
                    ssq = jnp.zeros((1, 1), jnp.float32)
                    for c in range(n_chunks):
                        _, n, s = chunk_view(i, c)
                        wait_chunk(i, c)
                        if c + 1 < n_chunks:
                            start_chunk(i, c + 1)           # in-weight double buffering
                        x = bufs[i][s, 0:n, :].astype(jnp.float32)
                        ps = jnp.sum(x * x, axis=1, keepdims=True)        # (n, 1)
                        ssq = ssq + jnp.sum(ps, axis=0, keepdims=True)    # (1, 1)
                    total = total + jnp.sqrt(ssq)                         # ||w_i||_2
                out_ref[0:1, 0:1] = total

    return kernel


def regularization_loss(weight_list, weight_decay=WEIGHT_DECAY, *,
                        chunk_bytes=CHUNK_BYTES_BUDGET):
    """weight_list: list of (name, array) — the 'weight' params, like torch named_parameters."""
    if weight_decay <= 0:
        raise ValueError("param weight_decay can not <= 0")

    # Collapse each weight to 2D (leading dim, flattened trailing dims).  This is a
    # layout-preserving reshape of a contiguous array (no HBM copy); it only makes DMA
    # chunks contiguous and vector lanes dense.  No pad-to-max, no stacked slab.
    arrs = []
    for _, w in weight_list:
        w = jnp.asarray(w)
        if w.size == 0:
            continue
        if w.ndim <= 1:
            w = w.reshape(1, max(1, w.size))
        else:
            w = w.reshape(w.shape[0], -1)
        arrs.append(w)

    if not arrs:
        return jnp.float32(0.0)

    num_w = len(arrs)
    shapes2d = tuple(tuple(map(int, a.shape)) for a in arrs)
    plans = tuple(_plan_weight(s, a.dtype.itemsize, chunk_bytes)
                  for s, a in zip(shapes2d, arrs))

    # Static greedy load-balance of weights across the core partitions (by byte count).
    load = [0] * NUM_CORE_PARTITIONS
    core_of = []
    for a in arrs:
        c = min(range(NUM_CORE_PARTITIONS), key=lambda k: load[k])
        core_of.append(c)
        load[c] += a.size * a.dtype.itemsize
    core_of = tuple(core_of)

    # TODO(synk): for models with many large matrices, add a global scratch budget
    # (shrink per-weight chunks / share buffers) instead of a fixed per-weight cap.
    scratch_shapes = []
    for (R, C), a, (chunk_rows, _, n_slots) in zip(shapes2d, arrs, plans):
        scratch_shapes.append(pltpu.VMEM((n_slots, chunk_rows, C), a.dtype))
        scratch_shapes.append(pltpu.SemaphoreType.DMA((n_slots,)))

    kernel = _make_kernel(shapes2d, plans, core_of)

    partials = pl.pallas_call(
        kernel,
        out_shape=jax.ShapeDtypeStruct((NUM_CORE_PARTITIONS * SUBLANE, LANE), jnp.float32),
        grid_spec=pltpu.PrefetchScalarGridSpec(
            num_scalar_prefetch=0,
            grid=(NUM_CORE_PARTITIONS,),
            in_specs=[pl.BlockSpec(memory_space=pl.ANY)] * num_w,  # weights stay in HBM
            out_specs=pl.BlockSpec((SUBLANE, LANE), lambda c: (c, 0)),
            scratch_shapes=scratch_shapes,
        ),
        compiler_params=pltpu.CompilerParams(
            dimension_semantics=("parallel",)),   # the 2 partitions shard across v7x TCs
    )(*arrs)

    # Tiny cross-partition combine (only non-zero entry per partition is [0, 0]);
    # kept in JAX because the partition axis is sharded across cores.
    return weight_decay * jnp.sum(partials)


def make_synthetic_model_weights():
    """Deterministic stand-in for `model.named_parameters()` weights (biases excluded)."""
    key = jax.random.PRNGKey(0)
    k1, k2, k3, k4 = jax.random.split(key, 4)
    return [
        ("conv1.weight", jax.random.normal(k1, (4, 4, 3, 3), jnp.float32) * 0.1),
        ("bn1.weight",   jax.random.normal(k2, (4,), jnp.float32) * 0.1),
        ("fc1.weight",   jax.random.normal(k3, (40, 16), jnp.float32) * 0.1),
        ("fc2.weight",   jax.random.normal(k4, (16, 8), jnp.float32) * 0.1),
    ]


if __name__ == "__main__":
    weight_list = make_synthetic_model_weights()
    names = [n for n, _ in weight_list]
    arrays = [w for _, w in weight_list]

    # Pure-JAX reference (mirrors torch: weight_decay * sum_i torch.norm(w_i, p=2)).
    ref = WEIGHT_DECAY * sum(jnp.linalg.norm(jnp.ravel(w)) for _, w in weight_list)

    # Production path (1 MiB chunks -> every test weight is a single DMA).
    loss_fn = jax.jit(lambda *ws: regularization_loss(list(zip(names, ws)), WEIGHT_DECAY))
    loss = jax.block_until_ready(loss_fn(*arrays))
    assert jnp.allclose(loss, ref, rtol=1e-5, atol=1e-8), (loss, ref)

    # Exercise the chunked, double-buffered DMA path (incl. a partial final chunk)
    # with a deliberately tiny chunk budget.
    loss_chunked = jax.block_until_ready(
        regularization_loss(weight_list, WEIGHT_DECAY, chunk_bytes=8 * 1024))
    assert jnp.allclose(loss_chunked, ref, rtol=1e-5, atol=1e-8), (loss_chunked, ref)

    print("KERNEL_OK")
</pallas_src>

<mosaic_0001>
module attributes {stable_mosaic.version = 11 : i64} {
  func.func @kernel(%arg0: i32, %arg1: memref<4x36xf32, #tpu.memory_space<any>>, %arg2: memref<1x4xf32, #tpu.memory_space<any>>, %arg3: memref<40x16xf32, #tpu.memory_space<any>>, %arg4: memref<16x8xf32, #tpu.memory_space<any>>, %arg5: memref<8x128xf32, #tpu.memory_space<vmem>>, %arg6: memref<1x4x36xf32, #tpu.memory_space<vmem>>, %arg7: memref<1x!tpu.dma_semaphore, #tpu.memory_space<semaphore_mem>>, %arg8: memref<1x1x4xf32, #tpu.memory_space<vmem>>, %arg9: memref<1x!tpu.dma_semaphore, #tpu.memory_space<semaphore_mem>>, %arg10: memref<1x40x16xf32, #tpu.memory_space<vmem>>, %arg11: memref<1x!tpu.dma_semaphore, #tpu.memory_space<semaphore_mem>>, %arg12: memref<1x16x8xf32, #tpu.memory_space<vmem>>, %arg13: memref<1x!tpu.dma_semaphore, #tpu.memory_space<semaphore_mem>>) attributes {dimension_semantics = [#tpu.dimension_semantics<parallel>], iteration_bounds = array<i64: 2>, scalar_prefetch = 0 : i64, scratch_operands = 8 : i64, tpu.core_type = #tpu.core_type<tc>, window_params = [{}, {}, {}, {}, {transform_indices = @transform_4, window_bounds = array<i64: 8, 128>}]} {
    %cst = arith.constant 0.000000e+00 : f32
    %0 = vector.broadcast %cst : f32 to vector<8x128xf32>
    %c0 = arith.constant 0 : index
    %c0_0 = arith.constant 0 : index
    %1 = vector.load %arg5[%c0, %c0_0] : memref<8x128xf32, #tpu.memory_space<vmem>>, vector<8x128xf32>
    tpu.vector_store %arg5[%c0, %c0_0], %0 {strides = array<i32>} : memref<8x128xf32, #tpu.memory_space<vmem>>, vector<8x128xf32>,
    %c0_i32 = arith.constant 0 : i32
    %2 = arith.cmpi eq, %arg0, %c0_i32 : i32
    %3 = arith.extui %2 : i1 to i32
    %c0_i32_1 = arith.constant 0 : i32
    %4 = arith.cmpi ne, %3, %c0_i32_1 : i32
    scf.if %4 {
      %c0_i32_3 = arith.constant 0 : i32
      %c0_i32_4 = arith.constant 0 : i32
      %c0_i32_5 = arith.constant 0 : i32
      %c0_i32_6 = arith.constant 0 : i32
      %8 = tpu.memref_slice %arg1[%c0_i32_5, %c0_i32_6] : memref<4x36xf32, #tpu.memory_space<any>> -> memref<4x36xf32, #tpu.memory_space<any>>
      %c0_i32_7 = arith.constant 0 : i32
      %c0_i32_8 = arith.constant 0 : i32
      %9 = tpu.memref_slice %arg6[%c0_i32_3, %c0_i32_7, %c0_i32_8] : memref<1x4x36xf32, #tpu.memory_space<vmem>> -> memref<1x4x36xf32, #tpu.memory_space<vmem>>
      %10 = tpu.memref_squeeze %9 : memref<1x4x36xf32, #tpu.memory_space<vmem>> -> memref<4x36xf32, #tpu.memory_space<vmem>>
      %11 = tpu.memref_slice %arg7[%c0_i32_4] : memref<1x!tpu.dma_semaphore, #tpu.memory_space<semaphore_mem>> -> memref<1x!tpu.dma_semaphore, #tpu.memory_space<semaphore_mem>>
      %12 = tpu.memref_squeeze %11 : memref<1x!tpu.dma_semaphore, #tpu.memory_space<semaphore_mem>> -> memref<!tpu.dma_semaphore, #tpu.memory_space<semaphore_mem>>
      tpu.enqueue_dma source(%8 : memref<4x36xf32, #tpu.memory_space<any>>) target(%10 : memref<4x36xf32, #tpu.memory_space<vmem>>) target_semaphore(%12 : memref<!tpu.dma_semaphore, #tpu.memory_space<semaphore_mem>>)
      %cst_9 = arith.constant 0.000000e+00 : f32
      %13 = vector.broadcast %cst_9 : f32 to vector<1x1xf32>
      %c0_i32_10 = arith.constant 0 : i32
      %c0_i32_11 = arith.constant 0 : i32
      %c0_i32_12 = arith.constant 0 : i32
      %c0_i32_13 = arith.constant 0 : i32
      %14 = tpu.memref_slice %arg4[%c0_i32_12, %c0_i32_13] : memref<16x8xf32, #tpu.memory_space<any>> -> memref<16x8xf32, #tpu.memory_space<any>>
      %c0_i32_14 = arith.constant 0 : i32
      %c0_i32_15 = arith.constant 0 : i32
      %15 = tpu.memref_slice %arg12[%c0_i32_10, %c0_i32_14, %c0_i32_15] : memref<1x16x8xf32, #tpu.memory_space<vmem>> -> memref<1x16x8xf32, #tpu.memory_space<vmem>>
      %16 = tpu.memref_squeeze %15 : memref<1x16x8xf32, #tpu.memory_space<vmem>> -> memref<16x8xf32, #tpu.memory_space<vmem>>
      %17 = tpu.memref_slice %arg13[%c0_i32_11] : memref<1x!tpu.dma_semaphore, #tpu.memory_space<semaphore_mem>> -> memref<1x!tpu.dma_semaphore, #tpu.memory_space<semaphore_mem>>
      %18 = tpu.memref_squeeze %17 : memref<1x!tpu.dma_semaphore, #tpu.memory_space<semaphore_mem>> -> memref<!tpu.dma_semaphore, #tpu.memory_space<semaphore_mem>>
      tpu.enqueue_dma source(%14 : memref<16x8xf32, #tpu.memory_space<any>>) target(%16 : memref<16x8xf32, #tpu.memory_space<vmem>>) target_semaphore(%18 : memref<!tpu.dma_semaphore, #tpu.memory_space<semaphore_mem>>)
      %cst_16 = arith.constant 0.000000e+00 : f32
      %19 = vector.broadcast %cst_16 : f32 to vector<1x1xf32>
      %c0_i32_17 = arith.constant 0 : i32
      %c0_i32_18 = arith.constant 0 : i32
      %c0_i32_19 = arith.constant 0 : i32
      %c0_i32_20 = arith.constant 0 : i32
      %20 = tpu.memref_slice %arg1[%c0_i32_19, %c0_i32_20] : memref<4x36xf32, #tpu.memory_space<any>> -> memref<4x36xf32, #tpu.memory_space<any>>
      %c0_i32_21 = arith.constant 0 : i32
      %c0_i32_22 = arith.constant 0 : i32
      %21 = tpu.memref_slice %arg6[%c0_i32_17, %c0_i32_21, %c0_i32_22] : memref<1x4x36xf32, #tpu.memory_space<vmem>> -> memref<1x4x36xf32, #tpu.memory_space<vmem>>
      %22 = tpu.memref_squeeze %21 : memref<1x4x36xf32, #tpu.memory_space<vmem>> -> memref<4x36xf32, #tpu.memory_space<vmem>>
      %23 = tpu.memref_slice %arg7[%c0_i32_18] : memref<1x!tpu.dma_semaphore, #tpu.memory_space<semaphore_mem>> -> memref<1x!tpu.dma_semaphore, #tpu.memory_space<semaphore_mem>>
      %24 = tpu.memref_squeeze %23 : memref<1x!tpu.dma_semaphore, #tpu.memory_space<semaphore_mem>> -> memref<!tpu.dma_semaphore, #tpu.memory_space<semaphore_mem>>
      tpu.wait_dma2 semaphore(%24 : memref<!tpu.dma_semaphore, #tpu.memory_space<semaphore_mem>>) src(%20 : memref<4x36xf32, #tpu.memory_space<any>>) dst(%22 : memref<4x36xf32, #tpu.memory_space<vmem>>)
      %c0_23 = arith.constant 0 : index
      %c0_24 = arith.constant 0 : index
      %c0_25 = arith.constant 0 : index
      %25 = vector.load %arg6[%c0_23, %c0_24, %c0_25] : memref<1x4x36xf32, #tpu.memory_space<vmem>>, vector<1x4x36xf32>
      %26 = vector.shape_cast %25 : vector<1x4x36xf32> to vector<4x36xf32>
      %27 = arith.mulf %26, %26 : vector<4x36xf32>
      %cst_26 = arith.constant dense<0.000000e+00> : vector<4xf32>
      %28 = vector.multi_reduction <add>, %27, %cst_26 [1] : vector<4x36xf32> to vector<4xf32>
      %29 = vector.shape_cast %28 : vector<4xf32> to vector<4x1xf32>
      %cst_27 = arith.constant dense<0.000000e+00> : vector<1xf32>
      %30 = vector.multi_reduction <add>, %29, %cst_27 [0] : vector<4x1xf32> to vector<1xf32>
      %31 = vector.shape_cast %30 : vector<1xf32> to vector<1x1xf32>
      %32 = arith.addf %19, %31 : vector<1x1xf32>
      %33 = math.sqrt %32 : vector<1x1xf32>
      %34 = arith.addf %13, %33 : vector<1x1xf32>
      %cst_28 = arith.constant 0.000000e+00 : f32
      %35 = vector.broadcast %cst_28 : f32 to vector<1x1xf32>
      %c0_i32_29 = arith.constant 0 : i32
      %c0_i32_30 = arith.constant 0 : i32
      %c0_i32_31 = arith.constant 0 : i32
      %c0_i32_32 = arith.constant 0 : i32
      %36 = tpu.memref_slice %arg4[%c0_i32_31, %c0_i32_32] : memref<16x8xf32, #tpu.memory_space<any>> -> memref<16x8xf32, #tpu.memory_space<any>>
      %c0_i32_33 = arith.constant 0 : i32
      %c0_i32_34 = arith.constant 0 : i32
      %37 = tpu.memref_slice %arg12[%c0_i32_29, %c0_i32_33, %c0_i32_34] : memref<1x16x8xf32, #tpu.memory_space<vmem>> -> memref<1x16x8xf32, #tpu.memory_space<vmem>>
      %38 = tpu.memref_squeeze %37 : memref<1x16x8xf32, #tpu.memory_space<vmem>> -> memref<16x8xf32, #tpu.memory_space<vmem>>
      %39 = tpu.memref_slice %arg13[%c0_i32_30] : memref<1x!tpu.dma_semaphore, #tpu.memory_space<semaphore_mem>> -> memref<1x!tpu.dma_semaphore, #tpu.memory_space<semaphore_mem>>
      %40 = tpu.memref_squeeze %39 : memref<1x!tpu.dma_semaphore, #tpu.memory_space<semaphore_mem>> -> memref<!tpu.dma_semaphore, #tpu.memory_space<semaphore_mem>>
      tpu.wait_dma2 semaphore(%40 : memref<!tpu.dma_semaphore, #tpu.memory_space<semaphore_mem>>) src(%36 : memref<16x8xf32, #tpu.memory_space<any>>) dst(%38 : memref<16x8xf32, #tpu.memory_space<vmem>>)
      %c0_35 = arith.constant 0 : index
      %c0_36 = arith.constant 0 : index
      %c0_37 = arith.constant 0 : index
      %41 = vector.load %arg12[%c0_35, %c0_36, %c0_37] : memref<1x16x8xf32, #tpu.memory_space<vmem>>, vector<1x16x8xf32>
      %42 = vector.shape_cast %41 : vector<1x16x8xf32> to vector<16x8xf32>
      %43 = arith.mulf %42, %42 : vector<16x8xf32>
      %cst_38 = arith.constant dense<0.000000e+00> : vector<16xf32>
      %44 = vector.multi_reduction <add>, %43, %cst_38 [1] : vector<16x8xf32> to vector<16xf32>
      %45 = vector.shape_cast %44 : vector<16xf32> to vector<16x1xf32>
      %cst_39 = arith.constant dense<0.000000e+00> : vector<1xf32>
      %46 = vector.multi_reduction <add>, %45, %cst_39 [0] : vector<16x1xf32> to vector<1xf32>
      %47 = vector.shape_cast %46 : vector<1xf32> to vector<1x1xf32>
      %48 = arith.addf %35, %47 : vector<1x1xf32>
      %49 = math.sqrt %48 : vector<1x1xf32>
      %50 = arith.addf %34, %49 : vector<1x1xf32>
      %c0_40 = arith.constant 0 : index
      %c0_41 = arith.constant 0 : index
      %51 = vector.load %arg5[%c0_40, %c0_41] : memref<8x128xf32, #tpu.memory_space<vmem>>, vector<1x1xf32>
      tpu.vector_store %arg5[%c0_40, %c0_41], %50 {strides = array<i32>} : memref<8x128xf32, #tpu.memory_space<vmem>>, vector<1x1xf32>,
    } else {
    }
    %c1_i32 = arith.constant 1 : i32
    %5 = arith.cmpi eq, %arg0, %c1_i32 : i32
    %6 = arith.extui %5 : i1 to i32
    %c0_i32_2 = arith.constant 0 : i32
    %7 = arith.cmpi ne, %6, %c0_i32_2 : i32
    scf.if %7 {
      %c0_i32_3 = arith.constant 0 : i32
      %c0_i32_4 = arith.constant 0 : i32
      %c0_i32_5 = arith.constant 0 : i32
      %c0_i32_6 = arith.constant 0 : i32
      %8 = tpu.memref_slice %arg2[%c0_i32_5, %c0_i32_6] : memref<1x4xf32, #tpu.memory_space<any>> -> memref<1x4xf32, #tpu.memory_space<any>>
      %c0_i32_7 = arith.constant 0 : i32
      %c0_i32_8 = arith.constant 0 : i32
      %9 = tpu.memref_slice %arg8[%c0_i32_3, %c0_i32_7, %c0_i32_8] : memref<1x1x4xf32, #tpu.memory_space<vmem>> -> memref<1x1x4xf32, #tpu.memory_space<vmem>>
      %10 = tpu.memref_squeeze %9 : memref<1x1x4xf32, #tpu.memory_space<vmem>> -> memref<1x4xf32, #tpu.memory_space<vmem>>
      %11 = tpu.memref_slice %arg9[%c0_i32_4] : memref<1x!tpu.dma_semaphore, #tpu.memory_space<semaphore_mem>> -> memref<1x!tpu.dma_semaphore, #tpu.memory_space<semaphore_mem>>
      %12 = tpu.memref_squeeze %11 : memref<1x!tpu.dma_semaphore, #tpu.memory_space<semaphore_mem>> -> memref<!tpu.dma_semaphore, #tpu.memory_space<semaphore_mem>>
      tpu.enqueue_dma source(%8 : memref<1x4xf32, #tpu.memory_space<any>>) target(%10 : memref<1x4xf32, #tpu.memory_space<vmem>>) target_semaphore(%12 : memref<!tpu.dma_semaphore, #tpu.memory_space<semaphore_mem>>)
      %cst_9 = arith.constant 0.000000e+00 : f32
      %13 = vector.broadcast %cst_9 : f32 to vector<1x1xf32>
      %c0_i32_10 = arith.constant 0 : i32
      %c0_i32_11 = arith.constant 0 : i32
      %c0_i32_12 = arith.constant 0 : i32
      %c0_i32_13 = arith.constant 0 : i32
      %14 = tpu.memref_slice %arg3[%c0_i32_12, %c0_i32_13] : memref<40x16xf32, #tpu.memory_space<any>> -> memref<40x16xf32, #tpu.memory_space<any>>
      %c0_i32_14 = arith.constant 0 : i32
      %c0_i32_15 = arith.constant 0 : i32
      %15 = tpu.memref_slice %arg10[%c0_i32_10, %c0_i32_14, %c0_i32_15] : memref<1x40x16xf32, #tpu.memory_space<vmem>> -> memref<1x40x16xf32, #tpu.memory_space<vmem>>
      %16 = tpu.memref_squeeze %15 : memref<1x40x16xf32, #tpu.memory_space<vmem>> -> memref<40x16xf32, #tpu.memory_space<vmem>>
      %17 = tpu.memref_slice %arg11[%c0_i32_11] : memref<1x!tpu.dma_semaphore, #tpu.memory_space<semaphore_mem>> -> memref<1x!tpu.dma_semaphore, #tpu.memory_space<semaphore_mem>>
      %18 = tpu.memref_squeeze %17 : memref<1x!tpu.dma_semaphore, #tpu.memory_space<semaphore_mem>> -> memref<!tpu.dma_semaphore, #tpu.memory_space<semaphore_mem>>
      tpu.enqueue_dma source(%14 : memref<40x16xf32, #tpu.memory_space<any>>) target(%16 : memref<40x16xf32, #tpu.memory_space<vmem>>) target_semaphore(%18 : memref<!tpu.dma_semaphore, #tpu.memory_space<semaphore_mem>>)
      %cst_16 = arith.constant 0.000000e+00 : f32
      %19 = vector.broadcast %cst_16 : f32 to vector<1x1xf32>
      %c0_i32_17 = arith.constant 0 : i32
      %c0_i32_18 = arith.constant 0 : i32
      %c0_i32_19 = arith.constant 0 : i32
      %c0_i32_20 = arith.constant 0 : i32
      %20 = tpu.memref_slice %arg2[%c0_i32_19, %c0_i32_20] : memref<1x4xf32, #tpu.memory_space<any>> -> memref<1x4xf32, #tpu.memory_space<any>>
      %c0_i32_21 = arith.constant 0 : i32
      %c0_i32_22 = arith.constant 0 : i32
      %21 = tpu.memref_slice %arg8[%c0_i32_17, %c0_i32_21, %c0_i32_22] : memref<1x1x4xf32, #tpu.memory_space<vmem>> -> memref<1x1x4xf32, #tpu.memory_space<vmem>>
      %22 = tpu.memref_squeeze %21 : memref<1x1x4xf32, #tpu.memory_space<vmem>> -> memref<1x4xf32, #tpu.memory_space<vmem>>
      %23 = tpu.memref_slice %arg9[%c0_i32_18] : memref<1x!tpu.dma_semaphore, #tpu.memory_space<semaphore_mem>> -> memref<1x!tpu.dma_semaphore, #tpu.memory_space<semaphore_mem>>
      %24 = tpu.memref_squeeze %23 : memref<1x!tpu.dma_semaphore, #tpu.memory_space<semaphore_mem>> -> memref<!tpu.dma_semaphore, #tpu.memory_space<semaphore_mem>>
      tpu.wait_dma2 semaphore(%24 : memref<!tpu.dma_semaphore, #tpu.memory_space<semaphore_mem>>) src(%20 : memref<1x4xf32, #tpu.memory_space<any>>) dst(%22 : memref<1x4xf32, #tpu.memory_space<vmem>>)
      %c0_23 = arith.constant 0 : index
      %c0_24 = arith.constant 0 : index
      %c0_25 = arith.constant 0 : index
      %25 = vector.load %arg8[%c0_23, %c0_24, %c0_25] : memref<1x1x4xf32, #tpu.memory_space<vmem>>, vector<1x1x4xf32>
      %26 = vector.shape_cast %25 : vector<1x1x4xf32> to vector<1x4xf32>
      %27 = arith.mulf %26, %26 : vector<1x4xf32>
      %cst_26 = arith.constant dense<0.000000e+00> : vector<1xf32>
      %28 = vector.multi_reduction <add>, %27, %cst_26 [1] : vector<1x4xf32> to vector<1xf32>
      %29 = vector.shape_cast %28 : vector<1xf32> to vector<1x1xf32>
      %cst_27 = arith.constant dense<0.000000e+00> : vector<1xf32>
      %30 = vector.multi_reduction <add>, %29, %cst_27 [0] : vector<1x1xf32> to vector<1xf32>
      %31 = vector.shape_cast %30 : vector<1xf32> to vector<1x1xf32>
      %32 = arith.addf %19, %31 : vector<1x1xf32>
      %33 = math.sqrt %32 : vector<1x1xf32>
      %34 = arith.addf %13, %33 : vector<1x1xf32>
      %cst_28 = arith.constant 0.000000e+00 : f32
      %35 = vector.broadcast %cst_28 : f32 to vector<1x1xf32>
      %c0_i32_29 = arith.constant 0 : i32
      %c0_i32_30 = arith.constant 0 : i32
      %c0_i32_31 = arith.constant 0 : i32
      %c0_i32_32 = arith.constant 0 : i32
      %36 = tpu.memref_slice %arg3[%c0_i32_31, %c0_i32_32] : memref<40x16xf32, #tpu.memory_space<any>> -> memref<40x16xf32, #tpu.memory_space<any>>
      %c0_i32_33 = arith.constant 0 : i32
      %c0_i32_34 = arith.constant 0 : i32
      %37 = tpu.memref_slice %arg10[%c0_i32_29, %c0_i32_33, %c0_i32_34] : memref<1x40x16xf32, #tpu.memory_space<vmem>> -> memref<1x40x16xf32, #tpu.memory_space<vmem>>
      %38 = tpu.memref_squeeze %37 : memref<1x40x16xf32, #tpu.memory_space<vmem>> -> memref<40x16xf32, #tpu.memory_space<vmem>>
      %39 = tpu.memref_slice %arg11[%c0_i32_30] : memref<1x!tpu.dma_semaphore, #tpu.memory_space<semaphore_mem>> -> memref<1x!tpu.dma_semaphore, #tpu.memory_space<semaphore_mem>>
      %40 = tpu.memref_squeeze %39 : memref<1x!tpu.dma_semaphore, #tpu.memory_space<semaphore_mem>> -> memref<!tpu.dma_semaphore, #tpu.memory_space<semaphore_mem>>
      tpu.wait_dma2 semaphore(%40 : memref<!tpu.dma_semaphore, #tpu.memory_space<semaphore_mem>>) src(%36 : memref<40x16xf32, #tpu.memory_space<any>>) dst(%38 : memref<40x16xf32, #tpu.memory_space<vmem>>)
      %c0_35 = arith.constant 0 : index
      %c0_36 = arith.constant 0 : index
      %c0_37 = arith.constant 0 : index
      %41 = vector.load %arg10[%c0_35, %c0_36, %c0_37] : memref<1x40x16xf32, #tpu.memory_space<vmem>>, vector<1x40x16xf32>
      %42 = vector.shape_cast %41 : vector<1x40x16xf32> to vector<40x16xf32>
      %43 = arith.mulf %42, %42 : vector<40x16xf32>
      %cst_38 = arith.constant dense<0.000000e+00> : vector<40xf32>
      %44 = vector.multi_reduction <add>, %43, %cst_38 [1] : vector<40x16xf32> to vector<40xf32>
      %45 = vector.shape_cast %44 : vector<40xf32> to vector<40x1xf32>
      %cst_39 = arith.constant dense<0.000000e+00> : vector<1xf32>
      %46 = vector.multi_reduction <add>, %45, %cst_39 [0] : vector<40x1xf32> to vector<1xf32>
      %47 = vector.shape_cast %46 : vector<1xf32> to vector<1x1xf32>
      %48 = arith.addf %35, %47 : vector<1x1xf32>
      %49 = math.sqrt %48 : vector<1x1xf32>
      %50 = arith.addf %34, %49 : vector<1x1xf32>
      %c0_40 = arith.constant 0 : index
      %c0_41 = arith.constant 0 : index
      %51 = vector.load %arg5[%c0_40, %c0_41] : memref<8x128xf32, #tpu.memory_space<vmem>>, vector<1x1xf32>
      tpu.vector_store %arg5[%c0_40, %c0_41], %50 {strides = array<i32>} : memref<8x128xf32, #tpu.memory_space<vmem>>, vector<1x1xf32>,
    } else {
    }
    return
  }
  func.func @transform_4(%arg0: i32) -> (i32, i32) {
    %c0_i32 = arith.constant 0 : i32
    %c0_i32_0 = arith.constant 0 : i32
    return %arg0, %c0_i32 : i32, i32
  }
}

</mosaic_0001>

<llo_original>
// kernel: _lambda_.1
$region0: #{_lambda_.1}
  #allocation0 [shape = 'u32[]', space=smem, size = 0x4, offset = 0x4, fixed_abs, tag = 'smem constant byte address 0x4 - core index']
  #allocation1 [shape = 'u32[144,128]{1,0:T(1,128)}', space=vmem, size = 0x12000, scoped, tag = 'internal scratch']
  #allocation2 [shape = 'f32[1,4,36]{2,1,0:T(4,128)}', space=vmem, size = 0x800, scoped, tag = 'scratch operand']
  #allocation3 [shape = 's32[1]{0}', space=sflag, size = 0x4, scoped, tag = 'scratch operand']
  #allocation4 [shape = 'f32[1,1,4]{2,1,0:T(1,128)}', space=vmem, size = 0x200, scoped, tag = 'scratch operand']
  #allocation5 [shape = 's32[1]{0}', space=sflag, size = 0x4, scoped, tag = 'scratch operand']
  #allocation6 [shape = 'f32[1,40,16]{2,1,0:T(8,128)}', space=vmem, size = 0x5000, scoped, tag = 'scratch operand']
  #allocation7 [shape = 's32[1]{0}', space=sflag, size = 0x4, scoped, tag = 'scratch operand']
  #allocation8 [shape = 'f32[1,16,8]{2,1,0:T(8,128)}', space=vmem, size = 0x2000, scoped, tag = 'scratch operand']
  #allocation9 [shape = 's32[1]{0}', space=sflag, size = 0x4, scoped, tag = 'scratch operand']
  #allocation10 [shape = 's32[]', space=sflag, size = 0x4, offset = 0, fixed_abs, tag = 'sflag constant byte address 0x0 - dummy sync flag']
  #allocation11 [shape = 's32[]', space=sflag, size = 0x4, offset = 0, fixed_abs, tag = 'sflag constant byte address 0x0 - dummy sync flag']
  #allocation12 [shape = 's32[]', space=sflag, size = 0x4, offset = 0, fixed_abs, tag = 'sflag constant byte address 0x0 - dummy sync flag']
  #allocation13 [shape = 's32[]', space=sflag, size = 0x4, offset = 0, fixed_abs, tag = 'sflag constant byte address 0x0 - dummy sync flag']
  %s0 = inlined_call_operand.vmem [shape: f32[4,36], index: 0, kind: input, shape index: {}]
  %s1 = inlined_call_operand.vmem [shape: f32[1,4], index: 1, kind: input, shape index: {}]
  %s2 = inlined_call_operand.vmem [shape: f32[40,16], index: 2, kind: input, shape index: {}]
  %s3 = inlined_call_operand.vmem [shape: f32[16,8], index: 3, kind: input, shape index: {}]
  %s4 = inlined_call_operand.vmem [shape: f32[16,128], index: 4, kind: output, shape index: {}]
  %s5 = sld [smem:[#allocation0]]
  $region161: #{_lambda_.1} parent=0
    _
  %s7 = ssub.s32 1, %s5
  %s8 = scalar_select 0, %s7, %s5
  loop: start=0, step=1, limit=3
  $region2: #{_lambda_.1} parent=0 // loop_pre_header
    _
  $region3: #{_lambda_.1} parent=0 // loop_header
    %s10 = sphi 0, %s14
    %p11 = scmp.ge.s32.totalorder %s10, 3
    %s19 = sphi 0, %s21
    %s22 = sphi 0, %s19
    %s32 = sphi 0, %s22
  $region4: #{_lambda_.1} parent=0 // loop_header_branch
    %13 = sbr.rel (%p11) target = $region8
  $region5: #{_lambda_.1} parent=0 // loop_body
    %s15 = ssub.s32 %s10, 1
    %s16 = sadd.s32 %s10, 1
    %s17 = ssub.s32 %s10, %s16
    %p18 = scmp.eq.s32.totalorder %s17, 0
    %s20 = sadd.s32 %s19, 1
    %s21 = scalar_select %p18, %s19, %s20
    %p23 = pneg %p18
    %p24 = scmp.eq.s32.totalorder %s10, 1
    %p25 = por %p23, %p24
    %p26 = scmp.ne.s32.totalorder %s19, %s22
    %p27 = scmp.eq.s32.totalorder %s10, 0
    %p28 = por %p26, %p27
    %p29 = scmp.ne.s32.totalorder %s19, %s22
    %p30 = scmp.eq.s32.totalorder %s15, 1
    %p31 = por %p29, %p30
    %p33 = scmp.ne.s32.totalorder %s22, %s32
    %p34 = scmp.eq.s32.totalorder %s15, 0
    %p35 = por %p33, %p34
    %p36 = scmp.lt.s32.totalorder %s10, 2
    // Predicated region
    $region9: #{_lambda_.1} parent=5 // pred_check
      %p37 = pneg %p36
    $region10: #{_lambda_.1} parent=5 // pred_check_branch
      %39 = sbr.rel (%p37) target = $region12
    $region11: #{_lambda_.1} parent=5 // pred_region
      %p40 = pneg %p28
      %p41 = pneg %p25
      %p42 = scmp.lt.s32.totalorder %s10, 1
      %s43 = scalar_select %p42, %s10, 1
      %s44 = smul.addr %s43, 8
      %s45 = scalar_lea.vmem %s4, %s44
      %p46 = scmp.lt.s32.totalorder %s10, 1
      %s47 = scalar_select %p46, %s10, 1
      %s48 = smul.addr %s47, 8
      %s49 = scalar_lea.vmem %s4, %s48
      %50 = vst [vmem:[%s49] sm:$0xff] 0.0
      %p51 = scmp.eq.s32.totalorder %s10, 0
      // Predicated region
      $region13: #{_lambda_.1} parent=11 // pred_check
        %p52 = pneg %p51
      $region14: #{_lambda_.1} parent=11 // pred_check_branch
        %54 = sbr.rel (%p52) target = $region16
      $region15: #{_lambda_.1} parent=11 // pred_region
        %p56 = scmp.lt.u32.totalorder 4, 8
        %p57 = pneg %p56
        // Predicated region
        $region17: #{_lambda_.1} parent=15 // pred_check
          _
        $region18: #{_lambda_.1} parent=15 // pred_check_branch
          %59 = sbr.rel (%p56) target = $region20
        $region19: #{_lambda_.1} parent=15 // pred_region
          %s74 = sand.u32 4, 7
          %p75 = scmp.eq.s32.totalorder %s74, 0
          %p76 = pneg %p75
          // Predicated region
          $region32: #{_lambda_.1} parent=19 // pred_check
            _
          $region33: #{_lambda_.1} parent=19 // pred_check_branch
            %78 = sbr.rel (%p75) target = $region35
          $region34: #{_lambda_.1} parent=19 // pred_region
            %s79 = sand.u32 4, 7
            %s80 = ssub.s32 4, %s79
            %s81 = scalar_lea.vmem %s0, %s80
            %s82 = ssub.s32 4, %s79
            %s83 = scalar_lea.vmem [#allocation2], %s82
            %s84 = sshllo.u32 0, %s79
            loop: start=0, step=1, limit=1
            $region36: #{_lambda_.1} parent=34 // loop_pre_header
              _
            $region37: #{_lambda_.1} parent=34 // loop_header
              %s86 = sphi 0, %s90
              %p87 = scmp.ge.s32.totalorder %s86, 1
              %s91 = sphi %s81, %s81
              %s92 = sphi %s83, %s83
            $region38: #{_lambda_.1} parent=34 // loop_header_branch
              %89 = sbr.rel (%p87) target = $region42
            $region39: #{_lambda_.1} parent=34 // loop_body
              %v93 = vld [vmem:[%s91] sm:%s84]
              %94 = vst [vmem:[%s92] sm:%s84] %v93
            $region40: #{_lambda_.1} parent=34 // loop_footer
              %s90 = sadd.s32 1, %s86
            $region41: #{_lambda_.1} parent=34 // loop_footer_branch
              %85 = sbr.rel target = $region37
            $region42: #{_lambda_.1} parent=34 // loop_exit
              _
          $region35: #{_lambda_.1} parent=19 // pred_fallthru
            _
        $region20: #{_lambda_.1} parent=15 // pred_fallthru
          _
        // Predicated region
        $region21: #{_lambda_.1} parent=15 // pred_check
          %p60 = pneg %p56
        $region22: #{_lambda_.1} parent=15 // pred_check_branch
          %62 = sbr.rel (%p60) target = $region24
        $region23: #{_lambda_.1} parent=15 // pred_region
          %s63 = sshllo.u32 0, 4
          loop: start=0, step=1, limit=1
          $region25: #{_lambda_.1} parent=23 // loop_pre_header
            _
          $region26: #{_lambda_.1} parent=23 // loop_header
            %s65 = sphi 0, %s69
            %p66 = scmp.ge.s32.totalorder %s65, 1
            %s70 = sphi %s0, %s0
            %s71 = sphi [#allocation2], [#allocation2]
          $region27: #{_lambda_.1} parent=23 // loop_header_branch
            %68 = sbr.rel (%p66) target = $region31
          $region28: #{_lambda_.1} parent=23 // loop_body
            %v72 = vld [vmem:[%s70] sm:%s63]
            %73 = vst [vmem:[%s71] sm:%s63] %v72
          $region29: #{_lambda_.1} parent=23 // loop_footer
            %s69 = sadd.s32 1, %s65
          $region30: #{_lambda_.1} parent=23 // loop_footer_branch
            %64 = sbr.rel target = $region26
          $region31: #{_lambda_.1} parent=23 // loop_exit
            _
        $region24: #{_lambda_.1} parent=15 // pred_fallthru
          _
        // Predicated region
        $region43: #{_lambda_.1} parent=15 // pred_check
          _
        $region44: #{_lambda_.1} parent=15 // pred_check_branch
          %97 = sbr.rel (0) target = $region46
        $region45: #{_lambda_.1} parent=15 // pred_region
          %98 = vsyncadd [#allocation3], 64
        $region46: #{_lambda_.1} parent=15 // pred_fallthru
          _
        %p100 = scmp.lt.u32.totalorder 16, 8
        %p101 = pneg %p100
        // Predicated region
        $region47: #{_lambda_.1} parent=15 // pred_check
          _
        $region48: #{_lambda_.1} parent=15 // pred_check_branch
          %103 = sbr.rel (%p100) target = $region50
        $region49: #{_lambda_.1} parent=15 // pred_region
          %s118 = sand.u32 16, 7
          %p119 = scmp.eq.s32.totalorder %s118, 0
          // Predicated region
          $region62: #{_lambda_.1} parent=49 // pred_check
            %p120 = pneg %p119
          $region63: #{_lambda_.1} parent=49 // pred_check_branch
            %122 = sbr.rel (%p120) target = $region65
          $region64: #{_lambda_.1} parent=49 // pred_region
            loop: start=0, step=1, limit=1
            $region66: #{_lambda_.1} parent=64 // loop_pre_header
              _
            $region67: #{_lambda_.1} parent=64 // loop_header
              %s124 = sphi 0, %s128
              %p125 = scmp.ge.s32.totalorder %s124, 1
              %s129 = sphi %s3, %s3
              %s130 = sphi [#allocation8], [#allocation8]
            $region68: #{_lambda_.1} parent=64 // loop_header_branch
              %127 = sbr.rel (%p125) target = $region72
            $region69: #{_lambda_.1} parent=64 // loop_body
              %v131 = vld [vmem:[%s129] sm:$0xff]
              %132 = vst [vmem:[%s130] sm:$0xff] %v131
              %v133 = vld [vmem:[%s129 + $0x8] sm:$0xff]
              %134 = vst [vmem:[%s130 + $0x8] sm:$0xff] %v133
            $region70: #{_lambda_.1} parent=64 // loop_footer
              %s128 = sadd.s32 1, %s124
            $region71: #{_lambda_.1} parent=64 // loop_footer_branch
              %123 = sbr.rel target = $region67
            $region72: #{_lambda_.1} parent=64 // loop_exit
              _
          $region65: #{_lambda_.1} parent=49 // pred_fallthru
            _
          %p135 = pneg %p119
          // Predicated region
          $region73: #{_lambda_.1} parent=49 // pred_check
            _
          $region74: #{_lambda_.1} parent=49 // pred_check_branch
            %137 = sbr.rel (%p119) target = $region76
          $region75: #{_lambda_.1} parent=49 // pred_region
            %s138 = sand.u32 16, 7
          $region76: #{_lambda_.1} parent=49 // pred_fallthru
            _
        $region50: #{_lambda_.1} parent=15 // pred_fallthru
          _
        // Predicated region
        $region51: #{_lambda_.1} parent=15 // pred_check
          %p104 = pneg %p100
        $region52: #{_lambda_.1} parent=15 // pred_check_branch
          %106 = sbr.rel (%p104) target = $region54
        $region53: #{_lambda_.1} parent=15 // pred_region
          %s107 = sshllo.u32 0, 16
          loop: start=0, step=1, limit=1
          $region55: #{_lambda_.1} parent=53 // loop_pre_header
            _
          $region56: #{_lambda_.1} parent=53 // loop_header
            %s109 = sphi 0, %s113
            %p110 = scmp.ge.s32.totalorder %s109, 1
            %s114 = sphi %s3, %s3
            %s115 = sphi [#allocation8], [#allocation8]
          $region57: #{_lambda_.1} parent=53 // loop_header_branch
            %112 = sbr.rel (%p110) target = $region61
          $region58: #{_lambda_.1} parent=53 // loop_body
            %v116 = vld [vmem:[%s114] sm:%s107]
            %117 = vst [vmem:[%s115] sm:%s107] %v116
          $region59: #{_lambda_.1} parent=53 // loop_footer
            %s113 = sadd.s32 1, %s109
          $region60: #{_lambda_.1} parent=53 // loop_footer_branch
            %108 = sbr.rel target = $region56
          $region61: #{_lambda_.1} parent=53 // loop_exit
            _
        $region54: #{_lambda_.1} parent=15 // pred_fallthru
          _
        // Predicated region
        $region77: #{_lambda_.1} parent=15 // pred_check
          _
        $region78: #{_lambda_.1} parent=15 // pred_check_branch
          %141 = sbr.rel (0) target = $region80
        $region79: #{_lambda_.1} parent=15 // pred_region
          %142 = vsyncadd [#allocation9], 256
        $region80: #{_lambda_.1} parent=15 // pred_fallthru
          _
        %s143 = smul.u32 4, 1
        %s144 = sshll.u32 %s143, 4
        %145 = dma.done [#allocation3], %s144
        %v146 = vld [vmem:[#allocation2] sm:$0xf]
        %v147 = vmul.f32 %v146, %v146
        %vm148 = vcmask 289792
        %v149 = vsel %vm148, %v147, 0.0
        %150 = vadd.xlane.f32.xlu0 %v149
        %v151 = vpop.xlane.xlu0 %150
        %vm152 = vcmask 1043456
        %v153 = vsel %vm152, %v151, 0.0
        %v154 = vrot.slane %v153, 4
        %v155 = vadd.f32 %v153, %v154
        %v156 = vrot.slane %v155, 2
        %v157 = vadd.f32 %v155, %v156
        %v158 = vrot.slane %v157, 1
        %v159 = vadd.f32 %v157, %v158
        %v160 = vadd.f32 %v159, 0.0
        %v161 = vrsqrt.pop %v160
        %v162 = vmul.f32 %v160, %v161
        %vm163 = vcmp.eq.f32.partialorder %v160, inf
        %v164 = vsel %vm163, %v160, %v162
        %vm165 = vcmp.eq.f32.partialorder %v160, 0.0
        %v166 = vand.u32 %v160, 2147483648
        %v167 = vsel %vm165, %v166, %v164
        %v168 = vadd.f32 %v167, 0.0
        %s169 = smul.u32 16, 1
        %s170 = sshll.u32 %s169, 4
        %171 = dma.done [#allocation9], %s170
        %v172 = vld [vmem:[#allocation8] sm:$0xff]
        %v173 = vld [vmem:[#allocation8 + $0x8] sm:$0xff]
        %v174 = vmul.f32 %v172, %v172
        %v175 = vmul.f32 %v173, %v173
        %vm176 = vcmask 64512
        %v177 = vsel %vm176, %v174, 0.0
        %178 = vadd.xlane.f32.xlu0 %v177
        %v179 = vpop.xlane.xlu0 %178
        %v180 = vsel %vm176, %v175, 0.0
        %181 = vadd.xlane.f32.xlu0 %v180
        %v182 = vpop.xlane.xlu0 %181
        %v183 = vadd.f32 %v179, %v182
        %v184 = vrot.slane %v183, 4
        %v185 = vadd.f32 %v183, %v184
        %v186 = vrot.slane %v185, 2
        %v187 = vadd.f32 %v185, %v186
        %v188 = vrot.slane %v187, 1
        %v189 = vadd.f32 %v187, %v188
        %v190 = vadd.f32 %v189, 0.0
        %v191 = vrsqrt.pop %v190
        %v192 = vmul.f32 %v190, %v191
        %vm193 = vcmp.eq.f32.partialorder %v190, inf
        %v194 = vsel %vm193, %v190, %v192
        %vm195 = vcmp.eq.f32.partialorder %v190, 0.0
        %v196 = vand.u32 %v190, 2147483648
        %v197 = vsel %vm195, %v196, %v194
        %v198 = vadd.f32 %v168, %v197
        %vm199 = vcmask 0
        %200 = vst.msk [vmem:[%s49] sm:$0x1] %vm199, %v198
      $region16: #{_lambda_.1} parent=11 // pred_fallthru
        _
      %p201 = scmp.eq.s32.totalorder %s10, 1
      // Predicated region
      $region81: #{_lambda_.1} parent=11 // pred_check
        %p202 = pneg %p201
      $region82: #{_lambda_.1} parent=11 // pred_check_branch
        %204 = sbr.rel (%p202) target = $region84
      $region83: #{_lambda_.1} parent=11 // pred_region
        %p206 = scmp.lt.u32.totalorder 1, 8
        %p207 = pneg %p206
        // Predicated region
        $region85: #{_lambda_.1} parent=83 // pred_check
          _
        $region86: #{_lambda_.1} parent=83 // pred_check_branch
          %209 = sbr.rel (%p206) target = $region88
        $region87: #{_lambda_.1} parent=83 // pred_region
          %s224 = sand.u32 1, 7
          %p225 = scmp.eq.s32.totalorder %s224, 0
          %p226 = pneg %p225
          // Predicated region
          $region100: #{_lambda_.1} parent=87 // pred_check
            _
          $region101: #{_lambda_.1} parent=87 // pred_check_branch
            %228 = sbr.rel (%p225) target = $region103
          $region102: #{_lambda_.1} parent=87 // pred_region
            %s229 = sand.u32 1, 7
            %s230 = ssub.s32 1, %s229
            %s231 = scalar_lea.vmem %s1, %s230
            %s232 = ssub.s32 1, %s229
            %s233 = scalar_lea.vmem [#allocation4], %s232
            %s234 = sshllo.u32 0, %s229
            loop: start=0, step=1, limit=1
            $region104: #{_lambda_.1} parent=102 // loop_pre_header
              _
            $region105: #{_lambda_.1} parent=102 // loop_header
              %s236 = sphi 0, %s240
              %p237 = scmp.ge.s32.totalorder %s236, 1
              %s241 = sphi %s231, %s231
              %s242 = sphi %s233, %s233
            $region106: #{_lambda_.1} parent=102 // loop_header_branch
              %239 = sbr.rel (%p237) target = $region110
            $region107: #{_lambda_.1} parent=102 // loop_body
              %v243 = vld [vmem:[%s241] sm:%s234]
              %244 = vst [vmem:[%s242] sm:%s234] %v243
            $region108: #{_lambda_.1} parent=102 // loop_footer
              %s240 = sadd.s32 1, %s236
            $region109: #{_lambda_.1} parent=102 // loop_footer_branch
              %235 = sbr.rel target = $region105
            $region110: #{_lambda_.1} parent=102 // loop_exit
              _
          $region103: #{_lambda_.1} parent=87 // pred_fallthru
            _
        $region88: #{_lambda_.1} parent=83 // pred_fallthru
          _
        // Predicated region
        $region89: #{_lambda_.1} parent=83 // pred_check
          %p210 = pneg %p206
        $region90: #{_lambda_.1} parent=83 // pred_check_branch
          %212 = sbr.rel (%p210) target = $region92
        $region91: #{_lambda_.1} parent=83 // pred_region
          %s213 = sshllo.u32 0, 1
          loop: start=0, step=1, limit=1
          $region93: #{_lambda_.1} parent=91 // loop_pre_header
            _
          $region94: #{_lambda_.1} parent=91 // loop_header
            %s215 = sphi 0, %s219
            %p216 = scmp.ge.s32.totalorder %s215, 1
            %s220 = sphi %s1, %s1
            %s221 = sphi [#allocation4], [#allocation4]
          $region95: #{_lambda_.1} parent=91 // loop_header_branch
            %218 = sbr.rel (%p216) target = $region99
          $region96: #{_lambda_.1} parent=91 // loop_body
            %v222 = vld [vmem:[%s220] sm:%s213]
            %223 = vst [vmem:[%s221] sm:%s213] %v222
          $region97: #{_lambda_.1} parent=91 // loop_footer
            %s219 = sadd.s32 1, %s215
          $region98: #{_lambda_.1} parent=91 // loop_footer_branch
            %214 = sbr.rel target = $region94
          $region99: #{_lambda_.1} parent=91 // loop_exit
            _
        $region92: #{_lambda_.1} parent=83 // pred_fallthru
          _
        // Predicated region
        $region111: #{_lambda_.1} parent=83 // pred_check
          _
        $region112: #{_lambda_.1} parent=83 // pred_check_branch
          %247 = sbr.rel (0) target = $region114
        $region113: #{_lambda_.1} parent=83 // pred_region
          %248 = vsyncadd [#allocation5], 16
        $region114: #{_lambda_.1} parent=83 // pred_fallthru
          _
        %p250 = scmp.lt.u32.totalorder 40, 8
        %p251 = pneg %p250
        // Predicated region
        $region115: #{_lambda_.1} parent=83 // pred_check
          _
        $region116: #{_lambda_.1} parent=83 // pred_check_branch
          %253 = sbr.rel (%p250) target = $region118
        $region117: #{_lambda_.1} parent=83 // pred_region
          %s268 = sand.u32 40, 7
          %p269 = scmp.eq.s32.totalorder %s268, 0
          // Predicated region
          $region130: #{_lambda_.1} parent=117 // pred_check
            %p270 = pneg %p269
          $region131: #{_lambda_.1} parent=117 // pred_check_branch
            %272 = sbr.rel (%p270) target = $region133
          $region132: #{_lambda_.1} parent=117 // pred_region
            loop: start=0, step=1, limit=1
            $region134: #{_lambda_.1} parent=132 // loop_pre_header
              _
            $region135: #{_lambda_.1} parent=132 // loop_header
              %s274 = sphi 0, %s278
              %p275 = scmp.ge.s32.totalorder %s274, 1
              %s279 = sphi %s2, %s2
              %s280 = sphi [#allocation6], [#allocation6]
            $region136: #{_lambda_.1} parent=132 // loop_header_branch
              %277 = sbr.rel (%p275) target = $region140
            $region137: #{_lambda_.1} parent=132 // loop_body
              %v281 = vld [vmem:[%s279] sm:$0xff]
              %282 = vst [vmem:[%s280] sm:$0xff] %v281
              %v283 = vld [vmem:[%s279 + $0x8] sm:$0xff]
              %284 = vst [vmem:[%s280 + $0x8] sm:$0xff] %v283
              %v285 = vld [vmem:[%s279 + $0x10] sm:$0xff]
              %286 = vst [vmem:[%s280 + $0x10] sm:$0xff] %v285
              %v287 = vld [vmem:[%s279 + $0x18] sm:$0xff]
              %288 = vst [vmem:[%s280 + $0x18] sm:$0xff] %v287
              %v289 = vld [vmem:[%s279 + $0x20] sm:$0xff]
              %290 = vst [vmem:[%s280 + $0x20] sm:$0xff] %v289
            $region138: #{_lambda_.1} parent=132 // loop_footer
              %s278 = sadd.s32 1, %s274
            $region139: #{_lambda_.1} parent=132 // loop_footer_branch
              %273 = sbr.rel target = $region135
            $region140: #{_lambda_.1} parent=132 // loop_exit
              _
          $region133: #{_lambda_.1} parent=117 // pred_fallthru
            _
          %p291 = pneg %p269
          // Predicated region
          $region141: #{_lambda_.1} parent=117 // pred_check
            _
          $region142: #{_lambda_.1} parent=117 // pred_check_branch
            %293 = sbr.rel (%p269) target = $region144
          $region143: #{_lambda_.1} parent=117 // pred_region
            %s294 = sand.u32 40, 7
          $region144: #{_lambda_.1} parent=117 // pred_fallthru
            _
        $region118: #{_lambda_.1} parent=83 // pred_fallthru
          _
        // Predicated region
        $region119: #{_lambda_.1} parent=83 // pred_check
          %p254 = pneg %p250
        $region120: #{_lambda_.1} parent=83 // pred_check_branch
          %256 = sbr.rel (%p254) target = $region122
        $region121: #{_lambda_.1} parent=83 // pred_region
          %s257 = sshllo.u32 0, 40
          loop: start=0, step=1, limit=1
          $region123: #{_lambda_.1} parent=121 // loop_pre_header
            _
          $region124: #{_lambda_.1} parent=121 // loop_header
            %s259 = sphi 0, %s263
            %p260 = scmp.ge.s32.totalorder %s259, 1
            %s264 = sphi %s2, %s2
            %s265 = sphi [#allocation6], [#allocation6]
          $region125: #{_lambda_.1} parent=121 // loop_header_branch
            %262 = sbr.rel (%p260) target = $region129
          $region126: #{_lambda_.1} parent=121 // loop_body
            %v266 = vld [vmem:[%s264] sm:%s257]
            %267 = vst [vmem:[%s265] sm:%s257] %v266
          $region127: #{_lambda_.1} parent=121 // loop_footer
            %s263 = sadd.s32 1, %s259
          $region128: #{_lambda_.1} parent=121 // loop_footer_branch
            %258 = sbr.rel target = $region124
          $region129: #{_lambda_.1} parent=121 // loop_exit
            _
        $region122: #{_lambda_.1} parent=83 // pred_fallthru
          _
        // Predicated region
        $region145: #{_lambda_.1} parent=83 // pred_check
          _
        $region146: #{_lambda_.1} parent=83 // pred_check_branch
          %297 = sbr.rel (0) target = $region148
        $region147: #{_lambda_.1} parent=83 // pred_region
          %298 = vsyncadd [#allocation7], 640
        $region148: #{_lambda_.1} parent=83 // pred_fallthru
          _
        %s299 = smul.u32 1, 1
        %s300 = sshll.u32 %s299, 4
        %301 = dma.done [#allocation5], %s300
        %v302 = vld [vmem:[#allocation4] sm:$0x1]
        %v303 = vmul.f32 %v302, %v302
        %vm304 = vcmask 24576
        %v305 = vsel %vm304, %v303, 0.0
        %306 = vadd.xlane.f32.xlu0 %v305
        %v307 = vpop.xlane.xlu0 %306
        %v308 = vadd.f32 %v307, 0.0
        %v309 = vadd.f32 %v308, 0.0
        %v310 = vrsqrt.pop %v309
        %v311 = vmul.f32 %v309, %v310
        %vm312 = vcmp.eq.f32.partialorder %v309, inf
        %v313 = vsel %vm312, %v309, %v311
        %vm314 = vcmp.eq.f32.partialorder %v309, 0.0
        %v315 = vand.u32 %v309, 2147483648
        %v316 = vsel %vm314, %v315, %v313
        %v317 = vadd.f32 %v316, 0.0
        %s318 = smul.u32 40, 1
        %s319 = sshll.u32 %s318, 4
        %320 = dma.done [#allocation7], %s319
        %v321 = vld [vmem:[#allocation6] sm:$0xff]
        %v322 = vld [vmem:[#allocation6 + $0x8] sm:$0xff]
        %v323 = vld [vmem:[#allocation6 + $0x10] sm:$0xff]
        %v324 = vld [vmem:[#allocation6 + $0x18] sm:$0xff]
        %v325 = vld [vmem:[#allocation6 + $0x20] sm:$0xff]
        %v326 = vmul.f32 %v321, %v321
        %v327 = vmul.f32 %v322, %v322
        %v328 = vmul.f32 %v323, %v323
        %v329 = vmul.f32 %v324, %v324
        %v330 = vmul.f32 %v325, %v325
        %vm331 = vcmask 130048
        %v332 = vsel %vm331, %v326, 0.0
        %333 = vadd.xlane.f32.xlu0 %v332
        %v334 = vpop.xlane.xlu0 %333
        %v335 = vsel %vm331, %v327, 0.0
        %336 = vadd.xlane.f32.xlu0 %v335
        %v337 = vpop.xlane.xlu0 %336
        %v338 = vsel %vm331, %v328, 0.0
        %339 = vadd.xlane.f32.xlu0 %v338
        %v340 = vpop.xlane.xlu0 %339
        %v341 = vsel %vm331, %v329, 0.0
        %342 = vadd.xlane.f32.xlu0 %v341
        %v343 = vpop.xlane.xlu0 %342
        %v344 = vsel %vm331, %v330, 0.0
        %345 = vadd.xlane.f32.xlu0 %v344
        %v346 = vpop.xlane.xlu0 %345
        %v347 = vadd.f32 %v334, %v337
        %v348 = vadd.f32 %v347, %v340
        %v349 = vadd.f32 %v348, %v343
        %v350 = vadd.f32 %v349, %v346
        %v351 = vrot.slane %v350, 4
        %v352 = vadd.f32 %v350, %v351
        %v353 = vrot.slane %v352, 2
        %v354 = vadd.f32 %v352, %v353
        %v355 = vrot.slane %v354, 1
        %v356 = vadd.f32 %v354, %v355
        %v357 = vadd.f32 %v356, 0.0
        %v358 = vrsqrt.pop %v357
        %v359 = vmul.f32 %v357, %v358
        %vm360 = vcmp.eq.f32.partialorder %v357, inf
        %v361 = vsel %vm360, %v357, %v359
        %vm362 = vcmp.eq.f32.partialorder %v357, 0.0
        %v363 = vand.u32 %v357, 2147483648
        %v364 = vsel %vm362, %v363, %v361
        %v365 = vadd.f32 %v317, %v364
        %vm366 = vcmask 0
        %367 = vst.msk [vmem:[%s49] sm:$0x1] %vm366, %v365
      $region84: #{_lambda_.1} parent=11 // pred_fallthru
        _
      %p368 = scmp.lt.s32.totalorder %s10, 1
      %s369 = scalar_select %p368, %s10, 1
      %s370 = smul.addr %s369, 8
      %s371 = scalar_lea.vmem %s4, %s370
      // Predicated region
      $region149: #{_lambda_.1} parent=11 // pred_check
        %p372 = pneg %p25
      $region150: #{_lambda_.1} parent=11 // pred_check_branch
        %374 = sbr.rel (%p372) target = $region152
      $region151: #{_lambda_.1} parent=11 // pred_region
        _
      $region152: #{_lambda_.1} parent=11 // pred_fallthru
        _
    $region12: #{_lambda_.1} parent=5 // pred_fallthru
      _
    %p375 = scmp.le.s32.totalorder 1, %s10
    // Predicated region
    $region153: #{_lambda_.1} parent=5 // pred_check
      %p376 = pneg %p375
    $region154: #{_lambda_.1} parent=5 // pred_check_branch
      %378 = sbr.rel (%p376) target = $region156
    $region155: #{_lambda_.1} parent=5 // pred_region
      %s379 = ssub.s32 %s10, 1
      // Predicated region
      $region157: #{_lambda_.1} parent=155 // pred_check
        %p380 = pneg %p31
      $region158: #{_lambda_.1} parent=155 // pred_check_branch
        %382 = sbr.rel (%p380) target = $region160
      $region159: #{_lambda_.1} parent=155 // pred_region
        %p383 = scmp.lt.s32.totalorder %s15, 1
        %s384 = scalar_select %p383, %s15, 1
        %s385 = smul.addr %s384, 8
        %s386 = scalar_lea.vmem %s4, %s385
      $region160: #{_lambda_.1} parent=155 // pred_fallthru
        _
    $region156: #{_lambda_.1} parent=5 // pred_fallthru
      _
  $region6: #{_lambda_.1} parent=0 // loop_footer
    %s14 = sadd.s32 1, %s10
  $region7: #{_lambda_.1} parent=0 // loop_footer_branch
    %9 = sbr.rel target = $region3
  $region8: #{_lambda_.1} parent=0 // loop_exit
    _
  %387 = vsyncmov [#allocation3]
  %s388 = vpop.sfrf %387
  %p389 = scmp.eq.s32.totalorder %s388, 0
  %p390 = pneg %p389
  %392 = shalt.err (%p390)
  %393 = vsyncmov [#allocation5]
  %s394 = vpop.sfrf %393
  %p395 = scmp.eq.s32.totalorder %s394, 0
  %p396 = pneg %p395
  %398 = shalt.err (%p396)
  %399 = vsyncmov [#allocation7]
  %s400 = vpop.sfrf %399
  %p401 = scmp.eq.s32.totalorder %s400, 0
  %p402 = pneg %p401
  %404 = shalt.err (%p402)
  %405 = vsyncmov [#allocation9]
  %s406 = vpop.sfrf %405
  %p407 = scmp.eq.s32.totalorder %s406, 0
  %p408 = pneg %p407
  %410 = shalt.err (%p408)

</llo_original>
